<compile_context>
chip_gen: v7x
topology: tpu7x:2x2x1
jax: 0.10.0
libtpu: 0.0.40
codegen_flags: <defaults>
</compile_context>

<pallas_src>
import numpy as np
import jax
import jax.numpy as jnp
from jax.experimental import pallas as pl
from jax.experimental.pallas import tpu as pltpu

LANE = 128
SUBLANE = 8
# (1024, 128) f32 tile = 512 KiB per operand; 3 buffers x 2 (double-buffer)
# ~= 3 MiB VMEM -> safe on every generation (incl. v7x's 32 MiB scoped default).
MAX_BLOCK_ROWS = 1024


def _round_up(a, b):
    return ((a + b - 1) // b) * b


# ----------------------------- kernels ------------------------------------ #

def _sub_kernel(x_ref, y_ref, o_ref):
    # Mixed input dtypes are promoted inside the kernel (no extra HBM cast pass).
    o_ref[...] = (x_ref[...] - y_ref[...]).astype(o_ref.dtype)


def _sub_scalar_rhs_kernel(s_ref, x_ref, o_ref):
    # x - scalar; scalar lives in SMEM (never materialized at full size in HBM).
    o_ref[...] = x_ref[...].astype(o_ref.dtype) - s_ref[0].astype(o_ref.dtype)


def _sub_scalar_lhs_kernel(s_ref, y_ref, o_ref):
    # scalar - y
    o_ref[...] = s_ref[0].astype(o_ref.dtype) - y_ref[...].astype(o_ref.dtype)


# ----------------------------- wrapper ------------------------------------ #

def _as_slab(arr, n, rows):
    """Flatten to a lane-dense (rows, 128) slab, padding only when needed."""
    flat = arr.reshape(-1)
    n_pad = rows * LANE
    if n_pad != n:
        flat = jnp.pad(flat, (0, n_pad - n))
    return flat.reshape(rows, LANE)


def qsubtract(x_left, x_right):
    """Pallas TPU implementation of QSubtract.forward (torch.subtract)."""
    x_left = jnp.asarray(x_left)
    x_right = jnp.asarray(x_right)

    out_shape = jnp.broadcast_shapes(x_left.shape, x_right.shape)
    out_dtype = jnp.result_type(x_left.dtype, x_right.dtype)
    n = int(np.prod(out_shape))

    if n == 0:
        return jnp.zeros(out_shape, out_dtype)

    # Lane-dense tiling: big (block_rows, 128) tiles; when the array is small
    # the single block equals the full (padded) extent.
    rows_needed = -(-n // LANE)
    block_rows = min(MAX_BLOCK_ROWS, _round_up(rows_needed, SUBLANE))
    rows = _round_up(rows_needed, block_rows)
    grid = (rows // block_rows,)

    dense_spec = pl.BlockSpec((block_rows, LANE), lambda i: (i, 0))
    compiler_params = pltpu.CompilerParams(dimension_semantics=("parallel",))
    out_sds = jax.ShapeDtypeStruct((rows, LANE), out_dtype)

    right_scalar = x_right.size == 1 and x_left.size > 1
    left_scalar = x_left.size == 1 and x_right.size > 1

    if right_scalar or left_scalar:
        # One operand is a single element: keep it in SMEM, never broadcast it.
        tensor = x_left if right_scalar else x_right
        scalar = x_right if right_scalar else x_left
        s_dtype = jnp.float32 if jnp.issubdtype(out_dtype, jnp.inexact) else jnp.int32
        s = scalar.reshape((1,)).astype(s_dtype)
        t2 = _as_slab(tensor, n, rows)  # tensor.size == n in this branch
        kernel = _sub_scalar_rhs_kernel if right_scalar else _sub_scalar_lhs_kernel
        out2 = pl.pallas_call(
            kernel,
            out_shape=out_sds,
            grid_spec=pltpu.PrefetchScalarGridSpec(
                num_scalar_prefetch=0,
                grid=grid,
                in_specs=[
                    pl.BlockSpec(memory_space=pltpu.MemorySpace.SMEM),
                    dense_spec,
                ],
                out_specs=dense_spec,
            ),
            compiler_params=compiler_params,
        )(s, t2)
    else:
        # General path: broadcast only the operand(s) that actually need it.
        x = x_left if x_left.shape == out_shape else jnp.broadcast_to(x_left, out_shape)
        y = x_right if x_right.shape == out_shape else jnp.broadcast_to(x_right, out_shape)
        x2 = _as_slab(x, n, rows)
        y2 = _as_slab(y, n, rows)
        # Alias lhs input buffer to the output when dtypes match (shape always
        # matches): removes a full-size output allocation; no bandwidth change.
        alias = {0: 0} if x2.dtype == out_dtype else {}
        out2 = pl.pallas_call(
            _sub_kernel,
            out_shape=out_sds,
            grid_spec=pltpu.PrefetchScalarGridSpec(
                num_scalar_prefetch=0,
                grid=grid,
                in_specs=[dense_spec, dense_spec],
                out_specs=dense_spec,
            ),
            compiler_params=compiler_params,
            input_output_aliases=alias,
        )(x2, y2)

    out_flat = out2.reshape(-1)
    if rows * LANE != n:
        out_flat = out_flat[:n]
    return out_flat.reshape(out_shape)


if __name__ == "__main__":
    key = jax.random.PRNGKey(0)
    k1, k2 = jax.random.split(key, 2)

    # NCHW-style tensors: batch=2, channels=4, spatial=16x16.
    x_left = jax.random.normal(k1, (2, 4, 16, 16), dtype=jnp.float32)
    x_right = jax.random.normal(k2, (2, 4, 16, 16), dtype=jnp.float32)

    out = qsubtract(x_left, x_right)
    jax.block_until_ready(out)
    np.testing.assert_allclose(
        np.asarray(out), np.asarray(x_left - x_right), rtol=0, atol=0
    )

    # Scalar-operand path (SMEM scalar, no full-size broadcast materialization).
    s = jnp.float32(0.5)
    out_s = qsubtract(x_left, s)
    jax.block_until_ready(out_s)
    np.testing.assert_allclose(
        np.asarray(out_s), np.asarray(x_left - s), rtol=0, atol=0
    )

    print("KERNEL_OK")
</pallas_src>

<mosaic_0001>
module attributes {stable_mosaic.version = 11 : i64} {
  func.func @_sub_kernel(%arg0: i32, %arg1: memref<16x128xf32, #tpu.memory_space<vmem>>, %arg2: memref<16x128xf32, #tpu.memory_space<vmem>>, %arg3: memref<16x128xf32, #tpu.memory_space<vmem>>) attributes {dimension_semantics = [#tpu.dimension_semantics<parallel>], iteration_bounds = array<i64: 1>, scalar_prefetch = 0 : i64, scratch_operands = 0 : i64, tpu.core_type = #tpu.core_type<tc>, window_params = [{transform_indices = @transform_0, window_bounds = array<i64: 16, 128>}, {transform_indices = @transform_1, window_bounds = array<i64: 16, 128>}, {transform_indices = @transform_2, window_bounds = array<i64: 16, 128>}]} {
    %c0 = arith.constant 0 : index
    %c0_0 = arith.constant 0 : index
    %0 = vector.load %arg1[%c0, %c0_0] : memref<16x128xf32, #tpu.memory_space<vmem>>, vector<16x128xf32>
    %c0_1 = arith.constant 0 : index
    %c0_2 = arith.constant 0 : index
    %1 = vector.load %arg2[%c0_1, %c0_2] : memref<16x128xf32, #tpu.memory_space<vmem>>, vector<16x128xf32>
    %2 = arith.subf %0, %1 : vector<16x128xf32>
    %c0_3 = arith.constant 0 : index
    %c0_4 = arith.constant 0 : index
    %3 = vector.load %arg3[%c0_3, %c0_4] : memref<16x128xf32, #tpu.memory_space<vmem>>, vector<16x128xf32>
    tpu.vector_store %arg3[%c0_3, %c0_4], %2 {strides = array<i32>} : memref<16x128xf32, #tpu.memory_space<vmem>>, vector<16x128xf32>,
    return
  }
  func.func @transform_0(%arg0: i32) -> (i32, i32) {
    %c0_i32 = arith.constant 0 : i32
    %c0_i32_0 = arith.constant 0 : i32
    return %arg0, %c0_i32 : i32, i32
  }
  func.func @transform_1(%arg0: i32) -> (i32, i32) {
    %c0_i32 = arith.constant 0 : i32
    %c0_i32_0 = arith.constant 0 : i32
    return %arg0, %c0_i32 : i32, i32
  }
  func.func @transform_2(%arg0: i32) -> (i32, i32) {
    %c0_i32 = arith.constant 0 : i32
    %c0_i32_0 = arith.constant 0 : i32
    return %arg0, %c0_i32 : i32, i32
  }
}

</mosaic_0001>

<llo_original>
// kernel: tpu_custom_call.1
$region0: #{tpu_custom_call.1}
  #allocation0 [shape = 'u32[]', space=smem, size = 0x4, offset = 0x4, fixed_abs, tag = 'smem constant byte address 0x4 - core index']
  #allocation1 [shape = 'u32[144,128]{1,0:T(1,128)}', space=vmem, size = 0x12000, scoped, tag = 'internal scratch']
  %s0 = inlined_call_operand.hbm [shape: f32[16,128], index: 0, kind: input, shape index: {}, may-alias: {0,2}]
  %s1 = inlined_call_operand.vmem [shape: f32[16,128], index: 1, kind: input, shape index: {}]
  %s2 = inlined_call_operand.hbm [shape: f32[16,128], index: 2, kind: output, shape index: {}, may-alias: {0,2}]
  %s3 = sld [smem:[#allocation0]]
  $region22: #{tpu_custom_call.1} parent=0
    _
  %s5 = ssub.s32 1, %s3
  %s6 = scalar_select 0, %s5, %s3
  $region1: #{tpu_custom_call.1} parent=0
    #allocation2 [shape = 'u8[8192]{0}', space=vmem, size = 0x2000, scoped, tag = 'input window, operand 0, single buffered']
    #allocation3 [shape = 's32[1]{0}', space=sflag, size = 0x4, scoped, tag = 'scoped memory for tpu_custom_call.1']
    #allocation4 [shape = 's32[1]{0}', space=sflag, size = 0x4, scoped, tag = 'scoped memory for tpu_custom_call.1']
    #allocation5 [shape = 'u8[8192]{0}', space=vmem, size = 0x2000, scoped, tag = 'output window, operand 0, single buffered']
    %7 = vsyncpa [#allocation3], 0
    %8 = vsyncpa [#allocation4], 0
    // Predicated region
    $region2: #{tpu_custom_call.1} parent=1 // pred_check
      _
    $region3: #{tpu_custom_call.1} parent=1 // pred_check_branch
      %10 = sbr.rel (0) target = $region5
    $region4: #{tpu_custom_call.1} parent=1 // pred_region
      %s12 = ssub.s32 256, 256
      %13 = vsyncadd [#allocation3], %s12
      %s14 = sshll.u32 [#allocation2], 4
      %s15 = int_to_ptr.vmem [resolvable:$true] %s14
      %20 = dma.hbm_to_vmem [thread:$0]  %s0, 256, %s15, [#allocation3], 128, 128, 8
    $region5: #{tpu_custom_call.1} parent=1 // pred_fallthru
      _
    // Predicated region
    $region6: #{tpu_custom_call.1} parent=1 // pred_check
      _
    $region7: #{tpu_custom_call.1} parent=1 // pred_check_branch
      %22 = sbr.rel (0) target = $region9
    $region8: #{tpu_custom_call.1} parent=1 // pred_region
      _
    $region9: #{tpu_custom_call.1} parent=1 // pred_fallthru
      _
    // Predicated region
    $region10: #{tpu_custom_call.1} parent=1 // pred_check
      _
    $region11: #{tpu_custom_call.1} parent=1 // pred_check_branch
      %24 = sbr.rel (0) target = $region13
    $region12: #{tpu_custom_call.1} parent=1 // pred_region
      %25 = dma.done [#allocation3], 256
    $region13: #{tpu_custom_call.1} parent=1 // pred_fallthru
      _
    %v26 = vld [vmem:[#allocation2] sm:$0xff]
    %v27 = vld [vmem:[#allocation2 + $0x8] sm:$0xff]
    %v28 = vld [vmem:[%s1] sm:$0xff]
    %v29 = vld [vmem:[%s1 + $0x8] sm:$0xff]
    %v30 = vsub.f32 %v26, %v28
    %v31 = vsub.f32 %v27, %v29
    %32 = vst [vmem:[#allocation5] sm:$0xff] %v30
    %33 = vst [vmem:[#allocation5 + $0x8] sm:$0xff] %v31
    // Predicated region
    $region14: #{tpu_custom_call.1} parent=1 // pred_check
      _
    $region15: #{tpu_custom_call.1} parent=1 // pred_check_branch
      %35 = sbr.rel (0) target = $region17
    $region16: #{tpu_custom_call.1} parent=1 // pred_region
      %s37 = ssub.s32 256, 256
      %38 = vsyncadd [#allocation4], %s37
      %s39 = sshll.u32 [#allocation5], 4
      %s40 = int_to_ptr.vmem [resolvable:$true] %s39
      %45 = dma.vmem_to_hbm [thread:$0]  %s40, 256, %s2, [#allocation4], 128, 128, 8
    $region17: #{tpu_custom_call.1} parent=1 // pred_fallthru
      _
    // Predicated region
    $region18: #{tpu_custom_call.1} parent=1 // pred_check
      _
    $region19: #{tpu_custom_call.1} parent=1 // pred_check_branch
      %47 = sbr.rel (0) target = $region21
    $region20: #{tpu_custom_call.1} parent=1 // pred_region
      %48 = dma.done [#allocation4], 256
    $region21: #{tpu_custom_call.1} parent=1 // pred_fallthru
      _
    %49 = vsyncpa [#allocation3], 1
    %50 = vsyncpa [#allocation4], 1

</llo_original>
